<compile_context>
chip_gen: v6e
topology: v6e:2x2x1
jax: 0.10.0
libtpu: 0.0.40
codegen_flags: <defaults>
</compile_context>

<pallas_src>
import jax
import jax.numpy as jnp
from jax import lax
from jax.experimental import pallas as pl
from jax.experimental.pallas import tpu as pltpu


def embedding_kernel(ids_ref, w_hbm, o_ref, copy_sems):
    """Gather one chunk of T token embeddings via row DMAs from HBM.

    ids_ref:   (N_pad,) int32 in SMEM (scalar-prefetched, flattened ids)
    w_hbm:     (V, D)  embedding table left in HBM (memory_space=pl.ANY)
    o_ref:     (T, D)  VMEM output tile for this grid step
    copy_sems: (W,)    DMA semaphores (W = number of in-flight row copies)
    """
    chunk = pl.program_id(0)
    T = o_ref.shape[0]
    V = w_hbm.shape[0]
    W = copy_sems.shape[0]
    base = chunk * T

    def row_copy(s):
        # Token id for slot s of this chunk, clamped for bounds safety.
        tid = jnp.clip(ids_ref[base + s], 0, V - 1)
        return pltpu.make_async_copy(
            w_hbm.at[pl.ds(tid, 1)],      # (1, D) row of the HBM table
            o_ref.at[pl.ds(s, 1)],        # (1, D) row of the VMEM output tile
            copy_sems.at[s % W],
        )

    def wait_copy(s):
        # Same-shaped descriptor; only semaphore slot / byte count matter.
        pltpu.make_async_copy(
            w_hbm.at[pl.ds(0, 1)],
            o_ref.at[pl.ds(s, 1)],
            copy_sems.at[s % W],
        ).wait()

    # Prologue: fill the DMA window (static, short unrolled loop).
    for s in range(min(W, T)):
        row_copy(s).start()

    # Steady state: wait for row s, keep the window full with row s + W.
    def body(s, carry):
        wait_copy(s)

        @pl.when(s + W < T)
        def _():
            row_copy(s + W).start()

        return carry

    lax.fori_loop(0, T, body, 0)


def embedding_lookup(
    token_ids: jax.Array,
    weight: jax.Array,
    *,
    tokens_per_step: int = 256,
    dma_window: int = 8,
) -> jax.Array:
    """token_ids: (B, S) int ; weight: (V, D) ; returns (B, S, D)."""
    B, S = token_ids.shape
    V, D = weight.shape
    N = B * S

    # Lane-dense (T, D) output chunks, T a multiple of 8 sublanes.
    T = max(8, min(tokens_per_step, ((N + 7) // 8) * 8))
    T = (T // 8) * 8
    n_chunks = pl.cdiv(N, T)
    N_pad = n_chunks * T

    ids = jnp.reshape(token_ids.astype(jnp.int32), (N,))
    if N_pad != N:
        ids = jnp.pad(ids, (0, N_pad - N))          # padded slots gather row 0

    grid_spec = pltpu.PrefetchScalarGridSpec(
        num_scalar_prefetch=1,                      # token ids -> SMEM
        grid=(n_chunks,),
        in_specs=[
            pl.BlockSpec(memory_space=pl.ANY),      # table stays in HBM
        ],
        out_specs=pl.BlockSpec((T, D), lambda c, ids: (c, 0)),
        scratch_shapes=[pltpu.SemaphoreType.DMA((dma_window,))],
    )

    out_flat = pl.pallas_call(
        embedding_kernel,
        out_shape=jax.ShapeDtypeStruct((N_pad, D), weight.dtype),
        grid_spec=grid_spec,
        compiler_params=pltpu.CompilerParams(
            dimension_semantics=("parallel",),
        ),
    )(ids, weight)

    return out_flat[:N].reshape(B, S, D)


def init_embedding_weight(key, vocab_size: int, d_model: int) -> jax.Array:
    # Matches nn.init.trunc_normal_(w, mean=0, std=1, a=-3, b=3)
    return jax.random.truncated_normal(
        key, -3.0, 3.0, (vocab_size, d_model), dtype=jnp.float32
    )


if __name__ == "__main__":
    vocab_size = 64
    d_model = 128
    batch, seq = 2, 8

    key = jax.random.PRNGKey(0)
    k_w, k_ids = jax.random.split(key)

    weight = init_embedding_weight(k_w, vocab_size, d_model)
    token_ids = jax.random.randint(k_ids, (batch, seq), 0, vocab_size, dtype=jnp.int32)

    out = embedding_lookup(token_ids, weight)
    out = jax.block_until_ready(out)

    ref = jnp.take(weight, token_ids, axis=0)  # == weight[token_ids]
    assert out.shape == (batch, seq, d_model)
    assert out.dtype == weight.dtype
    assert jnp.allclose(out, ref), "Pallas embedding mismatch vs reference gather"

    print("KERNEL_OK")
</pallas_src>

<mosaic_0001>
module attributes {stable_mosaic.version = 11 : i64} {
  func.func @embedding_kernel(%arg0: i32, %arg1: memref<16xi32, #tpu.memory_space<smem>>, %arg2: memref<64x128xf32, #tpu.memory_space<any>>, %arg3: memref<16x128xf32, #tpu.memory_space<vmem>>, %arg4: memref<8x!tpu.dma_semaphore, #tpu.memory_space<semaphore_mem>>) attributes {dimension_semantics = [#tpu.dimension_semantics<parallel>], iteration_bounds = array<i64: 1>, scalar_prefetch = 1 : i64, scratch_operands = 1 : i64, tpu.core_type = #tpu.core_type<tc>, window_params = [{}, {transform_indices = @transform_1, window_bounds = array<i64: 16, 128>}]} {
    %c16_i32 = arith.constant 16 : i32
    %0 = arith.muli %arg0, %c16_i32 : i32
    %c0_i32 = arith.constant 0 : i32
    %1 = arith.addi %0, %c0_i32 : i32
    %2 = arith.index_cast %1 : i32 to index
    %3 = memref.load %arg1[%2] : memref<16xi32, #tpu.memory_space<smem>>
    %c0_i32_0 = arith.constant 0 : i32
    %c63_i32 = arith.constant 63 : i32
    %4 = arith.maxsi %c0_i32_0, %3 : i32
    %5 = arith.minsi %c63_i32, %4 : i32
    %c0_i32_1 = arith.constant 0 : i32
    %c0_i32_2 = arith.constant 0 : i32
    %6 = tpu.memref_slice %arg2[%5, %c0_i32_2] : memref<64x128xf32, #tpu.memory_space<any>> -> memref<1x128xf32, #tpu.memory_space<any>>
    %c0_i32_3 = arith.constant 0 : i32
    %c0_i32_4 = arith.constant 0 : i32
    %7 = tpu.memref_slice %arg3[%c0_i32_3, %c0_i32_4] : memref<16x128xf32, #tpu.memory_space<vmem>> -> memref<1x128xf32, #tpu.memory_space<vmem>>
    %8 = tpu.memref_slice %arg4[%c0_i32_1] : memref<8x!tpu.dma_semaphore, #tpu.memory_space<semaphore_mem>> -> memref<1x!tpu.dma_semaphore, #tpu.memory_space<semaphore_mem>>
    %9 = tpu.memref_squeeze %8 : memref<1x!tpu.dma_semaphore, #tpu.memory_space<semaphore_mem>> -> memref<!tpu.dma_semaphore, #tpu.memory_space<semaphore_mem>>
    tpu.enqueue_dma source(%6 : memref<1x128xf32, #tpu.memory_space<any>>) target(%7 : memref<1x128xf32, #tpu.memory_space<vmem>>) target_semaphore(%9 : memref<!tpu.dma_semaphore, #tpu.memory_space<semaphore_mem>>)
    %c1_i32 = arith.constant 1 : i32
    %10 = arith.addi %0, %c1_i32 : i32
    %11 = arith.index_cast %10 : i32 to index
    %12 = memref.load %arg1[%11] : memref<16xi32, #tpu.memory_space<smem>>
    %c0_i32_5 = arith.constant 0 : i32
    %c63_i32_6 = arith.constant 63 : i32
    %13 = arith.maxsi %c0_i32_5, %12 : i32
    %14 = arith.minsi %c63_i32_6, %13 : i32
    %c1_i32_7 = arith.constant 1 : i32
    %c0_i32_8 = arith.constant 0 : i32
    %15 = tpu.memref_slice %arg2[%14, %c0_i32_8] : memref<64x128xf32, #tpu.memory_space<any>> -> memref<1x128xf32, #tpu.memory_space<any>>
    %c1_i32_9 = arith.constant 1 : i32
    %c0_i32_10 = arith.constant 0 : i32
    %16 = tpu.memref_slice %arg3[%c1_i32_9, %c0_i32_10] : memref<16x128xf32, #tpu.memory_space<vmem>> -> memref<1x128xf32, #tpu.memory_space<vmem>>
    %17 = tpu.memref_slice %arg4[%c1_i32_7] : memref<8x!tpu.dma_semaphore, #tpu.memory_space<semaphore_mem>> -> memref<1x!tpu.dma_semaphore, #tpu.memory_space<semaphore_mem>>
    %18 = tpu.memref_squeeze %17 : memref<1x!tpu.dma_semaphore, #tpu.memory_space<semaphore_mem>> -> memref<!tpu.dma_semaphore, #tpu.memory_space<semaphore_mem>>
    tpu.enqueue_dma source(%15 : memref<1x128xf32, #tpu.memory_space<any>>) target(%16 : memref<1x128xf32, #tpu.memory_space<vmem>>) target_semaphore(%18 : memref<!tpu.dma_semaphore, #tpu.memory_space<semaphore_mem>>)
    %c2_i32 = arith.constant 2 : i32
    %19 = arith.addi %0, %c2_i32 : i32
    %20 = arith.index_cast %19 : i32 to index
    %21 = memref.load %arg1[%20] : memref<16xi32, #tpu.memory_space<smem>>
    %c0_i32_11 = arith.constant 0 : i32
    %c63_i32_12 = arith.constant 63 : i32
    %22 = arith.maxsi %c0_i32_11, %21 : i32
    %23 = arith.minsi %c63_i32_12, %22 : i32
    %c2_i32_13 = arith.constant 2 : i32
    %c0_i32_14 = arith.constant 0 : i32
    %24 = tpu.memref_slice %arg2[%23, %c0_i32_14] : memref<64x128xf32, #tpu.memory_space<any>> -> memref<1x128xf32, #tpu.memory_space<any>>
    %c2_i32_15 = arith.constant 2 : i32
    %c0_i32_16 = arith.constant 0 : i32
    %25 = tpu.memref_slice %arg3[%c2_i32_15, %c0_i32_16] : memref<16x128xf32, #tpu.memory_space<vmem>> -> memref<1x128xf32, #tpu.memory_space<vmem>>
    %26 = tpu.memref_slice %arg4[%c2_i32_13] : memref<8x!tpu.dma_semaphore, #tpu.memory_space<semaphore_mem>> -> memref<1x!tpu.dma_semaphore, #tpu.memory_space<semaphore_mem>>
    %27 = tpu.memref_squeeze %26 : memref<1x!tpu.dma_semaphore, #tpu.memory_space<semaphore_mem>> -> memref<!tpu.dma_semaphore, #tpu.memory_space<semaphore_mem>>
    tpu.enqueue_dma source(%24 : memref<1x128xf32, #tpu.memory_space<any>>) target(%25 : memref<1x128xf32, #tpu.memory_space<vmem>>) target_semaphore(%27 : memref<!tpu.dma_semaphore, #tpu.memory_space<semaphore_mem>>)
    %c3_i32 = arith.constant 3 : i32
    %28 = arith.addi %0, %c3_i32 : i32
    %29 = arith.index_cast %28 : i32 to index
    %30 = memref.load %arg1[%29] : memref<16xi32, #tpu.memory_space<smem>>
    %c0_i32_17 = arith.constant 0 : i32
    %c63_i32_18 = arith.constant 63 : i32
    %31 = arith.maxsi %c0_i32_17, %30 : i32
    %32 = arith.minsi %c63_i32_18, %31 : i32
    %c3_i32_19 = arith.constant 3 : i32
    %c0_i32_20 = arith.constant 0 : i32
    %33 = tpu.memref_slice %arg2[%32, %c0_i32_20] : memref<64x128xf32, #tpu.memory_space<any>> -> memref<1x128xf32, #tpu.memory_space<any>>
    %c3_i32_21 = arith.constant 3 : i32
    %c0_i32_22 = arith.constant 0 : i32
    %34 = tpu.memref_slice %arg3[%c3_i32_21, %c0_i32_22] : memref<16x128xf32, #tpu.memory_space<vmem>> -> memref<1x128xf32, #tpu.memory_space<vmem>>
    %35 = tpu.memref_slice %arg4[%c3_i32_19] : memref<8x!tpu.dma_semaphore, #tpu.memory_space<semaphore_mem>> -> memref<1x!tpu.dma_semaphore, #tpu.memory_space<semaphore_mem>>
    %36 = tpu.memref_squeeze %35 : memref<1x!tpu.dma_semaphore, #tpu.memory_space<semaphore_mem>> -> memref<!tpu.dma_semaphore, #tpu.memory_space<semaphore_mem>>
    tpu.enqueue_dma source(%33 : memref<1x128xf32, #tpu.memory_space<any>>) target(%34 : memref<1x128xf32, #tpu.memory_space<vmem>>) target_semaphore(%36 : memref<!tpu.dma_semaphore, #tpu.memory_space<semaphore_mem>>)
    %c4_i32 = arith.constant 4 : i32
    %37 = arith.addi %0, %c4_i32 : i32
    %38 = arith.index_cast %37 : i32 to index
    %39 = memref.load %arg1[%38] : memref<16xi32, #tpu.memory_space<smem>>
    %c0_i32_23 = arith.constant 0 : i32
    %c63_i32_24 = arith.constant 63 : i32
    %40 = arith.maxsi %c0_i32_23, %39 : i32
    %41 = arith.minsi %c63_i32_24, %40 : i32
    %c4_i32_25 = arith.constant 4 : i32
    %c0_i32_26 = arith.constant 0 : i32
    %42 = tpu.memref_slice %arg2[%41, %c0_i32_26] : memref<64x128xf32, #tpu.memory_space<any>> -> memref<1x128xf32, #tpu.memory_space<any>>
    %c4_i32_27 = arith.constant 4 : i32
    %c0_i32_28 = arith.constant 0 : i32
    %43 = tpu.memref_slice %arg3[%c4_i32_27, %c0_i32_28] : memref<16x128xf32, #tpu.memory_space<vmem>> -> memref<1x128xf32, #tpu.memory_space<vmem>>
    %44 = tpu.memref_slice %arg4[%c4_i32_25] : memref<8x!tpu.dma_semaphore, #tpu.memory_space<semaphore_mem>> -> memref<1x!tpu.dma_semaphore, #tpu.memory_space<semaphore_mem>>
    %45 = tpu.memref_squeeze %44 : memref<1x!tpu.dma_semaphore, #tpu.memory_space<semaphore_mem>> -> memref<!tpu.dma_semaphore, #tpu.memory_space<semaphore_mem>>
    tpu.enqueue_dma source(%42 : memref<1x128xf32, #tpu.memory_space<any>>) target(%43 : memref<1x128xf32, #tpu.memory_space<vmem>>) target_semaphore(%45 : memref<!tpu.dma_semaphore, #tpu.memory_space<semaphore_mem>>)
    %c5_i32 = arith.constant 5 : i32
    %46 = arith.addi %0, %c5_i32 : i32
    %47 = arith.index_cast %46 : i32 to index
    %48 = memref.load %arg1[%47] : memref<16xi32, #tpu.memory_space<smem>>
    %c0_i32_29 = arith.constant 0 : i32
    %c63_i32_30 = arith.constant 63 : i32
    %49 = arith.maxsi %c0_i32_29, %48 : i32
    %50 = arith.minsi %c63_i32_30, %49 : i32
    %c5_i32_31 = arith.constant 5 : i32
    %c0_i32_32 = arith.constant 0 : i32
    %51 = tpu.memref_slice %arg2[%50, %c0_i32_32] : memref<64x128xf32, #tpu.memory_space<any>> -> memref<1x128xf32, #tpu.memory_space<any>>
    %c5_i32_33 = arith.constant 5 : i32
    %c0_i32_34 = arith.constant 0 : i32
    %52 = tpu.memref_slice %arg3[%c5_i32_33, %c0_i32_34] : memref<16x128xf32, #tpu.memory_space<vmem>> -> memref<1x128xf32, #tpu.memory_space<vmem>>
    %53 = tpu.memref_slice %arg4[%c5_i32_31] : memref<8x!tpu.dma_semaphore, #tpu.memory_space<semaphore_mem>> -> memref<1x!tpu.dma_semaphore, #tpu.memory_space<semaphore_mem>>
    %54 = tpu.memref_squeeze %53 : memref<1x!tpu.dma_semaphore, #tpu.memory_space<semaphore_mem>> -> memref<!tpu.dma_semaphore, #tpu.memory_space<semaphore_mem>>
    tpu.enqueue_dma source(%51 : memref<1x128xf32, #tpu.memory_space<any>>) target(%52 : memref<1x128xf32, #tpu.memory_space<vmem>>) target_semaphore(%54 : memref<!tpu.dma_semaphore, #tpu.memory_space<semaphore_mem>>)
    %c6_i32 = arith.constant 6 : i32
    %55 = arith.addi %0, %c6_i32 : i32
    %56 = arith.index_cast %55 : i32 to index
    %57 = memref.load %arg1[%56] : memref<16xi32, #tpu.memory_space<smem>>
    %c0_i32_35 = arith.constant 0 : i32
    %c63_i32_36 = arith.constant 63 : i32
    %58 = arith.maxsi %c0_i32_35, %57 : i32
    %59 = arith.minsi %c63_i32_36, %58 : i32
    %c6_i32_37 = arith.constant 6 : i32
    %c0_i32_38 = arith.constant 0 : i32
    %60 = tpu.memref_slice %arg2[%59, %c0_i32_38] : memref<64x128xf32, #tpu.memory_space<any>> -> memref<1x128xf32, #tpu.memory_space<any>>
    %c6_i32_39 = arith.constant 6 : i32
    %c0_i32_40 = arith.constant 0 : i32
    %61 = tpu.memref_slice %arg3[%c6_i32_39, %c0_i32_40] : memref<16x128xf32, #tpu.memory_space<vmem>> -> memref<1x128xf32, #tpu.memory_space<vmem>>
    %62 = tpu.memref_slice %arg4[%c6_i32_37] : memref<8x!tpu.dma_semaphore, #tpu.memory_space<semaphore_mem>> -> memref<1x!tpu.dma_semaphore, #tpu.memory_space<semaphore_mem>>
    %63 = tpu.memref_squeeze %62 : memref<1x!tpu.dma_semaphore, #tpu.memory_space<semaphore_mem>> -> memref<!tpu.dma_semaphore, #tpu.memory_space<semaphore_mem>>
    tpu.enqueue_dma source(%60 : memref<1x128xf32, #tpu.memory_space<any>>) target(%61 : memref<1x128xf32, #tpu.memory_space<vmem>>) target_semaphore(%63 : memref<!tpu.dma_semaphore, #tpu.memory_space<semaphore_mem>>)
    %c7_i32 = arith.constant 7 : i32
    %64 = arith.addi %0, %c7_i32 : i32
    %65 = arith.index_cast %64 : i32 to index
    %66 = memref.load %arg1[%65] : memref<16xi32, #tpu.memory_space<smem>>
    %c0_i32_41 = arith.constant 0 : i32
    %c63_i32_42 = arith.constant 63 : i32
    %67 = arith.maxsi %c0_i32_41, %66 : i32
    %68 = arith.minsi %c63_i32_42, %67 : i32
    %c7_i32_43 = arith.constant 7 : i32
    %c0_i32_44 = arith.constant 0 : i32
    %69 = tpu.memref_slice %arg2[%68, %c0_i32_44] : memref<64x128xf32, #tpu.memory_space<any>> -> memref<1x128xf32, #tpu.memory_space<any>>
    %c7_i32_45 = arith.constant 7 : i32
    %c0_i32_46 = arith.constant 0 : i32
    %70 = tpu.memref_slice %arg3[%c7_i32_45, %c0_i32_46] : memref<16x128xf32, #tpu.memory_space<vmem>> -> memref<1x128xf32, #tpu.memory_space<vmem>>
    %71 = tpu.memref_slice %arg4[%c7_i32_43] : memref<8x!tpu.dma_semaphore, #tpu.memory_space<semaphore_mem>> -> memref<1x!tpu.dma_semaphore, #tpu.memory_space<semaphore_mem>>
    %72 = tpu.memref_squeeze %71 : memref<1x!tpu.dma_semaphore, #tpu.memory_space<semaphore_mem>> -> memref<!tpu.dma_semaphore, #tpu.memory_space<semaphore_mem>>
    tpu.enqueue_dma source(%69 : memref<1x128xf32, #tpu.memory_space<any>>) target(%70 : memref<1x128xf32, #tpu.memory_space<vmem>>) target_semaphore(%72 : memref<!tpu.dma_semaphore, #tpu.memory_space<semaphore_mem>>)
    %c0_i32_47 = arith.constant 0 : i32
    %c16_i32_48 = arith.constant 16 : i32
    %73 = arith.addi %c0_i32_47, %c16_i32_48 : i32
    %c1_i32_49 = arith.constant 1 : i32
    scf.for %arg5 = %c0_i32_47 to %73 step %c1_i32_49  : i32 {
      %c8_i32 = arith.constant 8 : i32
      %c0_i32_51 = arith.constant 0 : i32
      %74 = arith.cmpi eq, %c8_i32, %c0_i32_51 : i32
      %c1_i32_52 = arith.constant 1 : i32
      %75 = arith.select %74, %c1_i32_52, %c8_i32 : i32
      %76 = arith.remsi %arg5, %75 : i32
      %c0_i32_53 = arith.constant 0 : i32
      %77 = arith.cmpi ne, %76, %c0_i32_53 : i32
      %c0_i32_54 = arith.constant 0 : i32
      %78 = arith.cmpi slt, %76, %c0_i32_54 : i32
      %c0_i32_55 = arith.constant 0 : i32
      %79 = arith.cmpi slt, %75, %c0_i32_55 : i32
      %80 = arith.xori %78, %79 : i1
      %81 = arith.andi %80, %77 : i1
      %82 = arith.addi %76, %75 : i32
      %83 = arith.select %81, %82, %76 : i32
      %c0_i32_56 = arith.constant 0 : i32
      %c0_i32_57 = arith.constant 0 : i32
      %84 = tpu.memref_slice %arg2[%c0_i32_56, %c0_i32_57] : memref<64x128xf32, #tpu.memory_space<any>> -> memref<1x128xf32, #tpu.memory_space<any>>
      %c0_i32_58 = arith.constant 0 : i32
      %85 = tpu.memref_slice %arg3[%arg5, %c0_i32_58] : memref<16x128xf32, #tpu.memory_space<vmem>> -> memref<1x128xf32, #tpu.memory_space<vmem>>
      %86 = tpu.memref_slice %arg4[%83] : memref<8x!tpu.dma_semaphore, #tpu.memory_space<semaphore_mem>> -> memref<1x!tpu.dma_semaphore, #tpu.memory_space<semaphore_mem>>
      %87 = tpu.memref_squeeze %86 : memref<1x!tpu.dma_semaphore, #tpu.memory_space<semaphore_mem>> -> memref<!tpu.dma_semaphore, #tpu.memory_space<semaphore_mem>>
      tpu.wait_dma2 semaphore(%87 : memref<!tpu.dma_semaphore, #tpu.memory_space<semaphore_mem>>) src(%84 : memref<1x128xf32, #tpu.memory_space<any>>) dst(%85 : memref<1x128xf32, #tpu.memory_space<vmem>>)
      %c8_i32_59 = arith.constant 8 : i32
      %88 = arith.addi %arg5, %c8_i32_59 : i32
      %c16_i32_60 = arith.constant 16 : i32
      %89 = arith.cmpi slt, %88, %c16_i32_60 : i32
      %90 = arith.extui %89 : i1 to i32
      %c0_i32_61 = arith.constant 0 : i32
      %91 = arith.cmpi ne, %90, %c0_i32_61 : i32
      scf.if %91 {
        %c8_i32_62 = arith.constant 8 : i32
        %92 = arith.addi %arg5, %c8_i32_62 : i32
        %93 = arith.addi %0, %92 : i32
        %94 = arith.index_cast %93 : i32 to index
        %95 = memref.load %arg1[%94] : memref<16xi32, #tpu.memory_space<smem>>
        %c0_i32_63 = arith.constant 0 : i32
        %c63_i32_64 = arith.constant 63 : i32
        %96 = arith.maxsi %c0_i32_63, %95 : i32
        %97 = arith.minsi %c63_i32_64, %96 : i32
        %c8_i32_65 = arith.constant 8 : i32
        %c0_i32_66 = arith.constant 0 : i32
        %98 = arith.cmpi eq, %c8_i32_65, %c0_i32_66 : i32
        %c1_i32_67 = arith.constant 1 : i32
        %99 = arith.select %98, %c1_i32_67, %c8_i32_65 : i32
        %100 = arith.remsi %92, %99 : i32
        %c0_i32_68 = arith.constant 0 : i32
        %101 = arith.cmpi ne, %100, %c0_i32_68 : i32
        %c0_i32_69 = arith.constant 0 : i32
        %102 = arith.cmpi slt, %100, %c0_i32_69 : i32
        %c0_i32_70 = arith.constant 0 : i32
        %103 = arith.cmpi slt, %99, %c0_i32_70 : i32
        %104 = arith.xori %102, %103 : i1
        %105 = arith.andi %104, %101 : i1
        %106 = arith.addi %100, %99 : i32
        %107 = arith.select %105, %106, %100 : i32
        %c0_i32_71 = arith.constant 0 : i32
        %108 = tpu.memref_slice %arg2[%97, %c0_i32_71] : memref<64x128xf32, #tpu.memory_space<any>> -> memref<1x128xf32, #tpu.memory_space<any>>
        %c0_i32_72 = arith.constant 0 : i32
        %109 = tpu.memref_slice %arg3[%92, %c0_i32_72] : memref<16x128xf32, #tpu.memory_space<vmem>> -> memref<1x128xf32, #tpu.memory_space<vmem>>
        %110 = tpu.memref_slice %arg4[%107] : memref<8x!tpu.dma_semaphore, #tpu.memory_space<semaphore_mem>> -> memref<1x!tpu.dma_semaphore, #tpu.memory_space<semaphore_mem>>
        %111 = tpu.memref_squeeze %110 : memref<1x!tpu.dma_semaphore, #tpu.memory_space<semaphore_mem>> -> memref<!tpu.dma_semaphore, #tpu.memory_space<semaphore_mem>>
        tpu.enqueue_dma source(%108 : memref<1x128xf32, #tpu.memory_space<any>>) target(%109 : memref<1x128xf32, #tpu.memory_space<vmem>>) target_semaphore(%111 : memref<!tpu.dma_semaphore, #tpu.memory_space<semaphore_mem>>)
      } else {
      }
    }
    %c16_i32_50 = arith.constant 16 : i32
    return
  }
  func.func @transform_1(%arg0: i32, %arg1: memref<16xi32, #tpu.memory_space<smem>>) -> (i32, i32) {
    %c0_i32 = arith.constant 0 : i32
    %c0_i32_0 = arith.constant 0 : i32
    return %arg0, %c0_i32 : i32, i32
  }
}

</mosaic_0001>

<llo_original>
// kernel: tpu_custom_call.1
$region0: #{tpu_custom_call.1}
  #allocation0 [shape = 'u32[]', space=smem, size = 0x4, offset = 0x4, fixed_abs, tag = 'smem constant byte address 0x4 - core index']
  #allocation1 [shape = 'u32[144,128]{1,0:T(1,128)}', space=vmem, size = 0x12000, scoped, tag = 'internal scratch']
  #allocation2 [shape = 's32[8]{0}', space=sflag, size = 0x20, scoped, tag = 'scratch operand']
  #allocation3 [shape = 's32[1]{0}', space=sflag, size = 0x4, scoped, tag = 'scoped memory for tpu_custom_call.1']
  #allocation4 [shape = 'u8[512]{0}', space=smem, size = 0x200, scoped, tag = 'prefetched SMEM operand 0']
  #allocation7 [shape = 's32[]', space=sflag, size = 0x4, offset = 0, fixed_abs, tag = 'sflag constant byte address 0x0 - dummy sync flag']
  #allocation8 [shape = 's32[]', space=sflag, size = 0x4, offset = 0, fixed_abs, tag = 'sflag constant byte address 0x0 - dummy sync flag']
  #allocation9 [shape = 'u32[]', space=smem, size = 0x4, offset = 0x44, fixed_abs, tag = 'smem constant byte address 0x44 - assertion arg 0']
  #allocation10 [shape = 'u32[]', space=smem, size = 0x4, offset = 0x48, fixed_abs, tag = 'smem constant byte address 0x48 - assertion arg 1']
  #allocation11 [shape = 's32[]', space=sflag, size = 0x4, offset = 0, fixed_abs, tag = 'sflag constant byte address 0x0 - dummy sync flag']
  #allocation12 [shape = 's32[]', space=sflag, size = 0x4, offset = 0, fixed_abs, tag = 'sflag constant byte address 0x0 - dummy sync flag']
  #allocation13 [shape = 's32[]', space=sflag, size = 0x4, offset = 0, fixed_abs, tag = 'sflag constant byte address 0x0 - dummy sync flag']
  #allocation14 [shape = 's32[]', space=sflag, size = 0x4, offset = 0, fixed_abs, tag = 'sflag constant byte address 0x0 - dummy sync flag']
  #allocation15 [shape = 's32[]', space=sflag, size = 0x4, offset = 0, fixed_abs, tag = 'sflag constant byte address 0x0 - dummy sync flag']
  #allocation16 [shape = 's32[]', space=sflag, size = 0x4, offset = 0, fixed_abs, tag = 'sflag constant byte address 0x0 - dummy sync flag']
  #allocation17 [shape = 's32[]', space=sflag, size = 0x4, offset = 0, fixed_abs, tag = 'sflag constant byte address 0x0 - dummy sync flag']
  #allocation18 [shape = 's32[]', space=sflag, size = 0x4, offset = 0, fixed_abs, tag = 'sflag constant byte address 0x0 - dummy sync flag']
  #allocation19 [shape = 's32[]', space=sflag, size = 0x4, offset = 0, fixed_abs, tag = 'sflag constant byte address 0x0 - dummy sync flag']
  #allocation20 [shape = 's32[]', space=sflag, size = 0x4, offset = 0, fixed_abs, tag = 'sflag constant byte address 0x0 - dummy sync flag']
  #allocation21 [shape = 's32[]', space=sflag, size = 0x4, offset = 0, fixed_abs, tag = 'sflag constant byte address 0x0 - dummy sync flag']
  #allocation22 [shape = 's32[]', space=sflag, size = 0x4, offset = 0, fixed_abs, tag = 'sflag constant byte address 0x0 - dummy sync flag']
  #allocation23 [shape = 's32[]', space=sflag, size = 0x4, offset = 0, fixed_abs, tag = 'sflag constant byte address 0x0 - dummy sync flag']
  #allocation24 [shape = 's32[]', space=sflag, size = 0x4, offset = 0, fixed_abs, tag = 'sflag constant byte address 0x0 - dummy sync flag']
  #allocation25 [shape = 's32[]', space=sflag, size = 0x4, offset = 0, fixed_abs, tag = 'sflag constant byte address 0x0 - dummy sync flag']
  #allocation26 [shape = 's32[]', space=sflag, size = 0x4, offset = 0, fixed_abs, tag = 'sflag constant byte address 0x0 - dummy sync flag']
  %s0 = inlined_call_operand.hbm [shape: s32[16], index: 0, kind: input, shape index: {}]
  %s1 = inlined_call_operand.hbm [shape: f32[64,128], index: 1, kind: input, shape index: {}]
  %s2 = inlined_call_operand.hbm [shape: f32[16,128], index: 2, kind: output, shape index: {}]
  %s3 = sld [smem:[#allocation0]]
  $region57: #{tpu_custom_call.1} parent=0
    _
  %s5 = ssub.s32 1, %s3
  %s6 = scalar_select 0, %s5, %s3
  %8 = dma.hbm_to_smem %s0, 16, [#allocation4], [#allocation3]
  %9 = dma.done [#allocation3], 16
  %10 = sfence
  $region1: #{tpu_custom_call.1} parent=0
    #allocation5 [shape = 'u8[8192]{0}', space=vmem, size = 0x2000, scoped, tag = 'output window, operand 0, single buffered']
    #allocation6 [shape = 's32[1]{0}', space=sflag, size = 0x4, scoped, tag = 'scoped memory for tpu_custom_call.1']
    %11 = vsyncpa [#allocation6], 0
    %s12 = smul.u32 0, 16
    %s13 = sld [smem:[#allocation4 + %s12]]
    %p14 = scmp.gt.s32.totalorder %s13, 0
    %s15 = scalar_select %p14, %s13, 0
    %p16 = scmp.lt.s32.totalorder %s15, 63
    %s17 = scalar_select %p16, %s15, 63
    %s18 = smul.addr %s17, 16
    %s19 = scalar_lea.hbm %s1, %s18
    // Predicated region
    $region2: #{tpu_custom_call.1} parent=1 // pred_check
      _
    $region3: #{tpu_custom_call.1} parent=1 // pred_check_branch
      %21 = sbr.rel target = $region5
    $region4: #{tpu_custom_call.1} parent=1 // pred_region
      %22 = sst [smem:[#allocation9]] [#allocation8]
      %23 = sst [smem:[#allocation10]] [#allocation7]
    $region5: #{tpu_custom_call.1} parent=1 // pred_fallthru
      _
    %25 = shalt.err (0)
    %s27 = sshll.u32 [#allocation5], 4
    %s28 = int_to_ptr.vmem [resolvable:$true] %s27
    %30 = dma.hbm_to_vmem [thread:$0]  %s19, 16, %s28, [#allocation2]
    %s31 = sadd.s32 %s12, 1
    %s32 = sld [smem:[#allocation4 + %s31]]
    %p33 = scmp.gt.s32.totalorder %s32, 0
    %s34 = scalar_select %p33, %s32, 0
    %p35 = scmp.lt.s32.totalorder %s34, 63
    %s36 = scalar_select %p35, %s34, 63
    %s37 = smul.addr %s36, 16
    %s38 = scalar_lea.hbm %s1, %s37
    %s39 = scalar_lea.vmem [#allocation5], 1
    %s40 = scalar_lea.sflag [#allocation2], 1
    // Predicated region
    $region6: #{tpu_custom_call.1} parent=1 // pred_check
      _
    $region7: #{tpu_custom_call.1} parent=1 // pred_check_branch
      %42 = sbr.rel target = $region9
    $region8: #{tpu_custom_call.1} parent=1 // pred_region
      %43 = sst [smem:[#allocation9]] [#allocation12]
      %44 = sst [smem:[#allocation10]] [#allocation11]
    $region9: #{tpu_custom_call.1} parent=1 // pred_fallthru
      _
    %46 = shalt.err (0)
    %s48 = sshll.u32 %s39, 4
    %s49 = int_to_ptr.vmem [resolvable:$true] %s48
    %51 = dma.hbm_to_vmem [thread:$0]  %s38, 16, %s49, %s40
    %s52 = sadd.s32 %s12, 2
    %s53 = sld [smem:[#allocation4 + %s52]]
    %p54 = scmp.gt.s32.totalorder %s53, 0
    %s55 = scalar_select %p54, %s53, 0
    %p56 = scmp.lt.s32.totalorder %s55, 63
    %s57 = scalar_select %p56, %s55, 63
    %s58 = smul.addr %s57, 16
    %s59 = scalar_lea.hbm %s1, %s58
    %s60 = scalar_lea.vmem [#allocation5], 2
    %s61 = scalar_lea.sflag [#allocation2], 2
    // Predicated region
    $region10: #{tpu_custom_call.1} parent=1 // pred_check
      _
    $region11: #{tpu_custom_call.1} parent=1 // pred_check_branch
      %63 = sbr.rel target = $region13
    $region12: #{tpu_custom_call.1} parent=1 // pred_region
      %64 = sst [smem:[#allocation9]] [#allocation14]
      %65 = sst [smem:[#allocation10]] [#allocation13]
    $region13: #{tpu_custom_call.1} parent=1 // pred_fallthru
      _
    %67 = shalt.err (0)
    %s69 = sshll.u32 %s60, 4
    %s70 = int_to_ptr.vmem [resolvable:$true] %s69
    %72 = dma.hbm_to_vmem [thread:$0]  %s59, 16, %s70, %s61
    %s73 = sadd.s32 %s12, 3
    %s74 = sld [smem:[#allocation4 + %s73]]
    %p75 = scmp.gt.s32.totalorder %s74, 0
    %s76 = scalar_select %p75, %s74, 0
    %p77 = scmp.lt.s32.totalorder %s76, 63
    %s78 = scalar_select %p77, %s76, 63
    %s79 = smul.addr %s78, 16
    %s80 = scalar_lea.hbm %s1, %s79
    %s81 = scalar_lea.vmem [#allocation5], 3
    %s82 = scalar_lea.sflag [#allocation2], 3
    // Predicated region
    $region14: #{tpu_custom_call.1} parent=1 // pred_check
      _
    $region15: #{tpu_custom_call.1} parent=1 // pred_check_branch
      %84 = sbr.rel target = $region17
    $region16: #{tpu_custom_call.1} parent=1 // pred_region
      %85 = sst [smem:[#allocation9]] [#allocation16]
      %86 = sst [smem:[#allocation10]] [#allocation15]
    $region17: #{tpu_custom_call.1} parent=1 // pred_fallthru
      _
    %88 = shalt.err (0)
    %s90 = sshll.u32 %s81, 4
    %s91 = int_to_ptr.vmem [resolvable:$true] %s90
    %93 = dma.hbm_to_vmem [thread:$0]  %s80, 16, %s91, %s82
    %s94 = sadd.s32 %s12, 4
    %s95 = sld [smem:[#allocation4 + %s94]]
    %p96 = scmp.gt.s32.totalorder %s95, 0
    %s97 = scalar_select %p96, %s95, 0
    %p98 = scmp.lt.s32.totalorder %s97, 63
    %s99 = scalar_select %p98, %s97, 63
    %s100 = smul.addr %s99, 16
    %s101 = scalar_lea.hbm %s1, %s100
    %s102 = scalar_lea.vmem [#allocation5], 4
    %s103 = scalar_lea.sflag [#allocation2], 4
    // Predicated region
    $region18: #{tpu_custom_call.1} parent=1 // pred_check
      _
    $region19: #{tpu_custom_call.1} parent=1 // pred_check_branch
      %105 = sbr.rel target = $region21
    $region20: #{tpu_custom_call.1} parent=1 // pred_region
      %106 = sst [smem:[#allocation9]] [#allocation18]
      %107 = sst [smem:[#allocation10]] [#allocation17]
    $region21: #{tpu_custom_call.1} parent=1 // pred_fallthru
      _
    %109 = shalt.err (0)
    %s111 = sshll.u32 %s102, 4
    %s112 = int_to_ptr.vmem [resolvable:$true] %s111
    %114 = dma.hbm_to_vmem [thread:$0]  %s101, 16, %s112, %s103
    %s115 = sadd.s32 %s12, 5
    %s116 = sld [smem:[#allocation4 + %s115]]
    %p117 = scmp.gt.s32.totalorder %s116, 0
    %s118 = scalar_select %p117, %s116, 0
    %p119 = scmp.lt.s32.totalorder %s118, 63
    %s120 = scalar_select %p119, %s118, 63
    %s121 = smul.addr %s120, 16
    %s122 = scalar_lea.hbm %s1, %s121
    %s123 = scalar_lea.vmem [#allocation5], 5
    %s124 = scalar_lea.sflag [#allocation2], 5
    // Predicated region
    $region22: #{tpu_custom_call.1} parent=1 // pred_check
      _
    $region23: #{tpu_custom_call.1} parent=1 // pred_check_branch
      %126 = sbr.rel target = $region25
    $region24: #{tpu_custom_call.1} parent=1 // pred_region
      %127 = sst [smem:[#allocation9]] [#allocation20]
      %128 = sst [smem:[#allocation10]] [#allocation19]
    $region25: #{tpu_custom_call.1} parent=1 // pred_fallthru
      _
    %130 = shalt.err (0)
    %s132 = sshll.u32 %s123, 4
    %s133 = int_to_ptr.vmem [resolvable:$true] %s132
    %135 = dma.hbm_to_vmem [thread:$0]  %s122, 16, %s133, %s124
    %s136 = sadd.s32 %s12, 6
    %s137 = sld [smem:[#allocation4 + %s136]]
    %p138 = scmp.gt.s32.totalorder %s137, 0
    %s139 = scalar_select %p138, %s137, 0
    %p140 = scmp.lt.s32.totalorder %s139, 63
    %s141 = scalar_select %p140, %s139, 63
    %s142 = smul.addr %s141, 16
    %s143 = scalar_lea.hbm %s1, %s142
    %s144 = scalar_lea.vmem [#allocation5], 6
    %s145 = scalar_lea.sflag [#allocation2], 6
    // Predicated region
    $region26: #{tpu_custom_call.1} parent=1 // pred_check
      _
    $region27: #{tpu_custom_call.1} parent=1 // pred_check_branch
      %147 = sbr.rel target = $region29
    $region28: #{tpu_custom_call.1} parent=1 // pred_region
      %148 = sst [smem:[#allocation9]] [#allocation22]
      %149 = sst [smem:[#allocation10]] [#allocation21]
    $region29: #{tpu_custom_call.1} parent=1 // pred_fallthru
      _
    %151 = shalt.err (0)
    %s153 = sshll.u32 %s144, 4
    %s154 = int_to_ptr.vmem [resolvable:$true] %s153
    %156 = dma.hbm_to_vmem [thread:$0]  %s143, 16, %s154, %s145
    %s157 = sadd.s32 %s12, 7
    %s158 = sld [smem:[#allocation4 + %s157]]
    %p159 = scmp.gt.s32.totalorder %s158, 0
    %s160 = scalar_select %p159, %s158, 0
    %p161 = scmp.lt.s32.totalorder %s160, 63
    %s162 = scalar_select %p161, %s160, 63
    %s163 = smul.addr %s162, 16
    %s164 = scalar_lea.hbm %s1, %s163
    %s165 = scalar_lea.vmem [#allocation5], 7
    %s166 = scalar_lea.sflag [#allocation2], 7
    // Predicated region
    $region30: #{tpu_custom_call.1} parent=1 // pred_check
      _
    $region31: #{tpu_custom_call.1} parent=1 // pred_check_branch
      %168 = sbr.rel target = $region33
    $region32: #{tpu_custom_call.1} parent=1 // pred_region
      %169 = sst [smem:[#allocation9]] [#allocation24]
      %170 = sst [smem:[#allocation10]] [#allocation23]
    $region33: #{tpu_custom_call.1} parent=1 // pred_fallthru
      _
    %172 = shalt.err (0)
    %s174 = sshll.u32 %s165, 4
    %s175 = int_to_ptr.vmem [resolvable:$true] %s174
    %177 = dma.hbm_to_vmem [thread:$0]  %s164, 16, %s175, %s166
    loop: start=0, step=1, limit=16
    $region34: #{tpu_custom_call.1} parent=1 // loop_pre_header
      _
    $region35: #{tpu_custom_call.1} parent=1 // loop_header
      %s179 = sphi 0, %s183
      %p180 = scmp.ge.s32.totalorder %s179, 16
    $region36: #{tpu_custom_call.1} parent=1 // loop_header_branch
      %182 = sbr.rel (%p180) target = $region40
    $region37: #{tpu_custom_call.1} parent=1 // loop_body
      %p184 = scmp.lt.s32.totalorder %s179, 0
      %s185 = ssub.s32 0, %s179
      %s186 = scalar_select %p184, %s185, %s179
      %s187 = sand.u32 %s186, 7
      %s188 = ssub.s32 0, %s187
      %s189 = scalar_select %p184, %s188, %s187
      %p190 = scmp.ne.s32.totalorder %s189, 0
      %p191 = scmp.lt.s32.totalorder %s189, 0
      %p192 = pnand %p191, %p190
      %p193 = pneg %p192
      %s194 = sadd.s32 %s189, 8
      %s195 = scalar_select %p193, %s194, %s189
      %s196 = scalar_lea.sflag [#allocation2], %s195
      %s197 = smul.u32 1, 1
      %s198 = sshll.u32 %s197, 4
      %199 = dma.done %s196, %s198
      %s200 = sadd.s32 %s179, 8
      %p201 = scmp.lt.s32.totalorder %s200, 16
      // Predicated region
      $region41: #{tpu_custom_call.1} parent=37 // pred_check
        %p202 = pneg %p201
      $region42: #{tpu_custom_call.1} parent=37 // pred_check_branch
        %204 = sbr.rel (%p202) target = $region44
      $region43: #{tpu_custom_call.1} parent=37 // pred_region
        %s205 = sadd.s32 %s12, %s200
        %s206 = sld [smem:[#allocation4 + %s205]]
        %p207 = scmp.gt.s32.totalorder %s206, 0
        %s208 = scalar_select %p207, %s206, 0
        %p209 = scmp.lt.s32.totalorder %s208, 63
        %s210 = scalar_select %p209, %s208, 63
        %p211 = scmp.lt.s32.totalorder %s200, 0
        %s212 = ssub.s32 0, %s200
        %s213 = scalar_select %p211, %s212, %s200
        %s214 = sand.u32 %s213, 7
        %s215 = ssub.s32 0, %s214
        %s216 = scalar_select %p211, %s215, %s214
        %p217 = scmp.ne.s32.totalorder %s216, 0
        %p218 = scmp.lt.s32.totalorder %s216, 0
        %p219 = pnand %p218, %p217
        %p220 = pneg %p219
        %s221 = sadd.s32 %s216, 8
        %s222 = scalar_select %p220, %s221, %s216
        %s223 = smul.addr %s210, 16
        %s224 = scalar_lea.hbm %s1, %s223
        %s225 = scalar_lea.vmem [#allocation5], %s200
        %s226 = scalar_lea.sflag [#allocation2], %s222
        // Predicated region
        $region45: #{tpu_custom_call.1} parent=43 // pred_check
          _
        $region46: #{tpu_custom_call.1} parent=43 // pred_check_branch
          %228 = sbr.rel target = $region48
        $region47: #{tpu_custom_call.1} parent=43 // pred_region
          %229 = sst [smem:[#allocation9]] [#allocation26]
          %230 = sst [smem:[#allocation10]] [#allocation25]
        $region48: #{tpu_custom_call.1} parent=43 // pred_fallthru
          _
        %232 = shalt.err (0)
        %s234 = sshll.u32 %s225, 4
        %s235 = int_to_ptr.vmem [resolvable:$true] %s234
        %237 = dma.hbm_to_vmem [thread:$0]  %s224, 16, %s235, %s226
      $region44: #{tpu_custom_call.1} parent=37 // pred_fallthru
        _
    $region38: #{tpu_custom_call.1} parent=1 // loop_footer
      %s183 = sadd.s32 1, %s179
    $region39: #{tpu_custom_call.1} parent=1 // loop_footer_branch
      %178 = sbr.rel target = $region35
    $region40: #{tpu_custom_call.1} parent=1 // loop_exit
      _
    // Predicated region
    $region49: #{tpu_custom_call.1} parent=1 // pred_check
      _
    $region50: #{tpu_custom_call.1} parent=1 // pred_check_branch
      %239 = sbr.rel (0) target = $region52
    $region51: #{tpu_custom_call.1} parent=1 // pred_region
      %s241 = ssub.s32 256, 256
      %242 = vsyncadd [#allocation6], %s241
      %s243 = sshll.u32 [#allocation5], 4
      %s244 = int_to_ptr.vmem [resolvable:$true] %s243
      %249 = dma.vmem_to_hbm [thread:$0]  %s244, 256, %s2, [#allocation6], 128, 128, 8
    $region52: #{tpu_custom_call.1} parent=1 // pred_fallthru
      _
    // Predicated region
    $region53: #{tpu_custom_call.1} parent=1 // pred_check
      _
    $region54: #{tpu_custom_call.1} parent=1 // pred_check_branch
      %251 = sbr.rel (0) target = $region56
    $region55: #{tpu_custom_call.1} parent=1 // pred_region
      %252 = dma.done [#allocation6], 256
    $region56: #{tpu_custom_call.1} parent=1 // pred_fallthru
      _
    %253 = vsyncpa [#allocation6], 1
  %254 = vsyncmov [#allocation2]
  %s255 = vpop.sfrf %254
  %p256 = scmp.eq.s32.totalorder %s255, 0
  %p257 = pneg %p256
  %259 = shalt.err (%p257)
  %s260 = scalar_lea.sflag [#allocation2], 1
  %261 = vsyncmov %s260
  %s262 = vpop.sfrf %261
  %p263 = scmp.eq.s32.totalorder %s262, 0
  %p264 = pneg %p263
  %266 = shalt.err (%p264)
  %s267 = scalar_lea.sflag [#allocation2], 2
  %268 = vsyncmov %s267
  %s269 = vpop.sfrf %268
  %p270 = scmp.eq.s32.totalorder %s269, 0
  %p271 = pneg %p270
  %273 = shalt.err (%p271)
  %s274 = scalar_lea.sflag [#allocation2], 3
  %275 = vsyncmov %s274
  %s276 = vpop.sfrf %275
  %p277 = scmp.eq.s32.totalorder %s276, 0
  %p278 = pneg %p277
  %280 = shalt.err (%p278)
  %s281 = scalar_lea.sflag [#allocation2], 4
  %282 = vsyncmov %s281
  %s283 = vpop.sfrf %282
  %p284 = scmp.eq.s32.totalorder %s283, 0
  %p285 = pneg %p284
  %287 = shalt.err (%p285)
  %s288 = scalar_lea.sflag [#allocation2], 5
  %289 = vsyncmov %s288
  %s290 = vpop.sfrf %289
  %p291 = scmp.eq.s32.totalorder %s290, 0
  %p292 = pneg %p291
  %294 = shalt.err (%p292)
  %s295 = scalar_lea.sflag [#allocation2], 6
  %296 = vsyncmov %s295
  %s297 = vpop.sfrf %296
  %p298 = scmp.eq.s32.totalorder %s297, 0
  %p299 = pneg %p298
  %301 = shalt.err (%p299)
  %s302 = scalar_lea.sflag [#allocation2], 7
  %303 = vsyncmov %s302
  %s304 = vpop.sfrf %303
  %p305 = scmp.eq.s32.totalorder %s304, 0
  %p306 = pneg %p305
  %308 = shalt.err (%p306)

</llo_original>
